<compile_context>
chip_gen: v6e
topology: v6e:2x2x1
jax: 0.10.0
libtpu: 0.0.40
codegen_flags: <defaults>
</compile_context>

<pallas_src>
import functools

import jax
import jax.numpy as jnp
from jax import lax
from jax.experimental import pallas as pl
from jax.experimental.pallas import tpu as pltpu

_LANES = 128
_SUBLANES = 8
_MAX_BLOCK_ROWS = 8192        # (8192, 128) f32 = 4 MiB per stream buffer
_VMEM_LIMIT_BYTES = 32 << 20  # 2 streams x 2 bufs x 4 MiB + small acc/out


def _cdiv(a, b):
    return -(-a // b)


def _round_up(n, m):
    return _cdiv(n, m) * m


def _focal_reduce_kernel(x_ref, t_ref, out_ref, acc_ref, *,
                         gamma, valid_rows, block_rows, needs_mask,
                         binary_targets):
    """Accumulate per-tile focal loss into an (8, 128) VMEM vreg accumulator."""
    i = pl.program_id(1)

    @pl.when(i == 0)
    def _():
        acc_ref[...] = jnp.zeros_like(acc_ref)

    x = x_ref[...].astype(jnp.float32)
    t = t_ref[...].astype(jnp.float32)

    if needs_mask:
        # The last block(s) read past the end of the array; clamp the garbage
        # rows to (logit=-100, target=0) BEFORE any exp/log so they contribute
        # exactly zero (bce == 0) and never inject Inf/NaN.
        blk = pl.program_id(0) * pl.num_programs(1) + i
        row = blk * block_rows + lax.broadcasted_iota(jnp.int32, x.shape, 0)
        valid = row < valid_rows
        x = jnp.where(valid, x, -100.0)
        t = jnp.where(valid, t, 0.0)

    # Numerically-stable BCE with logits (== F.binary_cross_entropy_with_logits):
    #   bce = max(x, 0) - x*t + log1p(exp(-|x|))
    e = jnp.exp(-jnp.abs(x))
    bce = jnp.maximum(x, 0.0) - x * t + jnp.log1p(e)

    if binary_targets:
        # exp(x*t - max(x,0)) is either 1 or e when t in {0,1}; this replaces a
        # third full-precision EUP exp with a VALU select + near-free vrcp.
        sel = jnp.where((x >= 0.0) == (t >= 0.5), 1.0, e)
        pt = sel * pl.reciprocal(1.0 + e, approx=True)
    else:
        pt = jnp.exp(-bce)          # general (soft-target) fallback

    omp = jnp.maximum(1.0 - pt, 0.0)
    if gamma == 2:
        w = omp * omp
    elif gamma == 1:
        w = omp
    elif gamma == 0:
        w = jnp.ones_like(omp)
    else:
        w = omp ** gamma            # non-integer gamma: exp/log path on EUP
    y = w * bce                     # alpha and 1/N folded into the final scale

    # Tile -> one vreg: rows pack 8-per-vreg, so the reshape is free and the
    # axis-0 reduction is a pure VPU vadd tree (no XLU, no big acc RMW).
    acc_ref[...] += jnp.sum(y.reshape(-1, _SUBLANES, _LANES), axis=0)

    @pl.when(i == pl.num_programs(1) - 1)
    def _():
        out_ref[...] = acc_ref[...]


def focal_loss(inputs, targets, alpha=0.45, gamma=2, reduction="mean",
               binary_targets=True):
    """Pallas TPU implementation of FocalLoss.forward ('mean' / 'sum')."""
    assert inputs.shape == targets.shape
    # TODO(synk): reduction='none' (element-wise output) not implemented; only
    #             'mean' and 'sum' are supported by this reduction kernel.
    assert reduction in ("mean", "sum")

    total = int(inputs.size)
    x = jnp.ravel(inputs)
    t = jnp.ravel(targets)

    # 2-D lane-dense view. Fast path (lane-multiple size, >= 16 rows): pure
    # metadata reshape, zero extra HBM traffic; ragged row tails are masked
    # in-kernel. Slow path (ragged lane tail or tiny input): tail-pad only,
    # with (-100, 0) values whose focal-loss contribution is exactly zero.
    rows = _cdiv(total, _LANES)
    if rows < 2 * _SUBLANES:
        rows = _round_up(max(rows, _SUBLANES), _SUBLANES)
    if rows * _LANES != total:
        pad = rows * _LANES - total
        x = jnp.pad(x, (0, pad), constant_values=-100.0)
        t = jnp.pad(t, (0, pad), constant_values=0.0)
    x2 = x.reshape(rows, _LANES)
    t2 = t.reshape(rows, _LANES)

    # Adaptive blocking: shard row-blocks across 2 TensorCores (v7x megacore;
    # a harmless serial loop on v5e/v6e), cap each block at _MAX_BLOCK_ROWS,
    # round block height to the 8-sublane granule (tail waste <= 7 rows).
    num_splits = 2 if rows >= 2 * _SUBLANES else 1
    blocks_per_split = max(1, _cdiv(_cdiv(rows, num_splits), _MAX_BLOCK_ROWS))
    nblocks = num_splits * blocks_per_split
    block_rows = _round_up(_cdiv(rows, nblocks), _SUBLANES)
    needs_mask = nblocks * block_rows != rows

    kernel = functools.partial(
        _focal_reduce_kernel,
        gamma=gamma,
        valid_rows=rows,
        block_rows=block_rows,
        needs_mask=needs_mask,
        binary_targets=bool(binary_targets),
    )

    in_spec = pl.BlockSpec((block_rows, _LANES),
                           lambda c, i: (c * blocks_per_split + i, 0))
    partials = pl.pallas_call(
        kernel,
        out_shape=jax.ShapeDtypeStruct((num_splits * _SUBLANES, _LANES),
                                       jnp.float32),
        grid_spec=pltpu.PrefetchScalarGridSpec(
            num_scalar_prefetch=0,
            grid=(num_splits, blocks_per_split),
            in_specs=[in_spec, in_spec],
            out_specs=pl.BlockSpec((_SUBLANES, _LANES), lambda c, i: (c, 0)),
            scratch_shapes=[pltpu.VMEM((_SUBLANES, _LANES), jnp.float32)],
        ),
        compiler_params=pltpu.CompilerParams(
            dimension_semantics=("parallel", "arbitrary"),
            vmem_limit_bytes=_VMEM_LIMIT_BYTES),
    )(x2, t2)

    scale = float(alpha) / total if reduction == "mean" else float(alpha)
    return jnp.sum(partials) * scale


def _focal_loss_ref(inputs, targets, alpha=0.45, gamma=2):
    x = inputs.astype(jnp.float32)
    t = targets.astype(jnp.float32)
    bce = jnp.maximum(x, 0.0) - x * t + jnp.log1p(jnp.exp(-jnp.abs(x)))
    pt = jnp.exp(-bce)
    return jnp.mean(alpha * (1.0 - pt) ** gamma * bce)


if __name__ == "__main__":
    key = jax.random.PRNGKey(0)
    k1, k2, k3, k4 = jax.random.split(key, 4)

    # Logits + binary targets at a small NCHW-like shape (lane-multiple size:
    # exercises the zero-copy fast path).
    x = jax.random.normal(k1, (2, 4, 16, 16), dtype=jnp.float32)
    targets = (jax.random.uniform(k2, (2, 4, 16, 16)) > 0.5).astype(jnp.float32)

    loss = jax.block_until_ready(
        focal_loss(x, targets, alpha=0.45, gamma=2, reduction="mean"))
    ref = _focal_loss_ref(x, targets, alpha=0.45, gamma=2)
    assert jnp.allclose(loss, ref, rtol=1e-3, atol=1e-6), (loss, ref)

    loss_sum = jax.block_until_ready(
        focal_loss(x, targets, alpha=0.45, gamma=2, reduction="sum"))
    assert jnp.allclose(loss_sum, ref * x.size, rtol=1e-3, atol=1e-5), (
        loss_sum, ref * x.size)

    # Odd row count (17 rows of 128): exercises the in-kernel ragged-tail mask.
    x2 = jax.random.normal(k3, (2, 4, 17, 16), dtype=jnp.float32)
    t2 = (jax.random.uniform(k4, (2, 4, 17, 16)) > 0.5).astype(jnp.float32)
    loss2 = jax.block_until_ready(
        focal_loss(x2, t2, alpha=0.45, gamma=2, reduction="mean"))
    ref2 = _focal_loss_ref(x2, t2, alpha=0.45, gamma=2)
    assert jnp.allclose(loss2, ref2, rtol=1e-3, atol=1e-6), (loss2, ref2)

    print("KERNEL_OK")
</pallas_src>

<mosaic_0001>
module attributes {stable_mosaic.version = 11 : i64} {
  func.func @_focal_reduce_kernel(%arg0: i32, %arg1: i32, %arg2: memref<8x128xf32, #tpu.memory_space<vmem>>, %arg3: memref<8x128xf32, #tpu.memory_space<vmem>>, %arg4: memref<8x128xf32, #tpu.memory_space<vmem>>, %arg5: memref<8x128xf32, #tpu.memory_space<vmem>>) attributes {dimension_semantics = [#tpu.dimension_semantics<parallel>, #tpu.dimension_semantics<arbitrary>], iteration_bounds = array<i64: 2, 1>, scalar_prefetch = 0 : i64, scratch_operands = 1 : i64, tpu.core_type = #tpu.core_type<tc>, window_params = [{transform_indices = @transform_0, window_bounds = array<i64: 8, 128>}, {transform_indices = @transform_1, window_bounds = array<i64: 8, 128>}, {transform_indices = @transform_2, window_bounds = array<i64: 8, 128>}]} {
    %c0_i32 = arith.constant 0 : i32
    %0 = arith.cmpi eq, %arg1, %c0_i32 : i32
    %1 = arith.extui %0 : i1 to i32
    %c0_i32_0 = arith.constant 0 : i32
    %2 = arith.cmpi ne, %1, %c0_i32_0 : i32
    scf.if %2 {
      %cst_19 = arith.constant 0.000000e+00 : f32
      %41 = vector.broadcast %cst_19 : f32 to vector<8x128xf32>
      %c0_20 = arith.constant 0 : index
      %c0_21 = arith.constant 0 : index
      %42 = vector.load %arg5[%c0_20, %c0_21] : memref<8x128xf32, #tpu.memory_space<vmem>>, vector<8x128xf32>
      tpu.vector_store %arg5[%c0_20, %c0_21], %41 {strides = array<i32>} : memref<8x128xf32, #tpu.memory_space<vmem>>, vector<8x128xf32>,
    } else {
    }
    %c0 = arith.constant 0 : index
    %c0_1 = arith.constant 0 : index
    %3 = vector.load %arg2[%c0, %c0_1] : memref<8x128xf32, #tpu.memory_space<vmem>>, vector<8x128xf32>
    %c0_2 = arith.constant 0 : index
    %c0_3 = arith.constant 0 : index
    %4 = vector.load %arg3[%c0_2, %c0_3] : memref<8x128xf32, #tpu.memory_space<vmem>>, vector<8x128xf32>
    %5 = math.absf %3 : vector<8x128xf32>
    %cst = arith.constant 0.000000e+00 : f32
    %6 = vector.broadcast %cst : f32 to vector<8x128xf32>
    %7 = arith.subf %6, %5 : vector<8x128xf32>
    %8 = math.exp %7 : vector<8x128xf32>
    %cst_4 = arith.constant 0.000000e+00 : f32
    %9 = vector.broadcast %cst_4 : f32 to vector<8x128xf32>
    %10 = arith.maximumf %3, %9 : vector<8x128xf32>
    %11 = arith.mulf %3, %4 : vector<8x128xf32>
    %12 = arith.subf %10, %11 : vector<8x128xf32>
    %13 = math.log1p %8 : vector<8x128xf32>
    %14 = arith.addf %12, %13 : vector<8x128xf32>
    %cst_5 = arith.constant 0.000000e+00 : f32
    %15 = vector.broadcast %cst_5 : f32 to vector<8x128xf32>
    %16 = arith.cmpf oge, %3, %15 : vector<8x128xf32>
    %cst_6 = arith.constant 5.000000e-01 : f32
    %17 = vector.broadcast %cst_6 : f32 to vector<8x128xf32>
    %18 = arith.cmpf oge, %4, %17 : vector<8x128xf32>
    %19 = arith.xori %16, %18 : vector<8x128xi1>
    %cst_7 = arith.constant dense<true> : vector<8x128xi1>
    %20 = arith.xori %19, %cst_7 : vector<8x128xi1>
    %cst_8 = arith.constant 1.000000e+00 : f32
    %21 = vector.broadcast %cst_8 : f32 to vector<8x128xf32>
    %22 = arith.select %20, %21, %8 : vector<8x128xi1>, vector<8x128xf32>
    %cst_9 = arith.constant 1.000000e+00 : f32
    %23 = vector.broadcast %cst_9 : f32 to vector<8x128xf32>
    %24 = arith.addf %23, %8 : vector<8x128xf32>
    %25 = tpu.reciprocal %24 {approx = true} : vector<8x128xf32> -> vector<8x128xf32>
    %26 = arith.mulf %22, %25 : vector<8x128xf32>
    %cst_10 = arith.constant 1.000000e+00 : f32
    %27 = vector.broadcast %cst_10 : f32 to vector<8x128xf32>
    %28 = arith.subf %27, %26 : vector<8x128xf32>
    %cst_11 = arith.constant 0.000000e+00 : f32
    %29 = vector.broadcast %cst_11 : f32 to vector<8x128xf32>
    %30 = arith.maximumf %28, %29 : vector<8x128xf32>
    %31 = arith.mulf %30, %30 : vector<8x128xf32>
    %32 = arith.mulf %31, %14 : vector<8x128xf32>
    %c0_12 = arith.constant 0 : index
    %c0_13 = arith.constant 0 : index
    %33 = vector.load %arg5[%c0_12, %c0_13] : memref<8x128xf32, #tpu.memory_space<vmem>>, vector<8x128xf32>
    %34 = vector.shape_cast %32 : vector<8x128xf32> to vector<1x8x128xf32>
    %cst_14 = arith.constant dense<0.000000e+00> : vector<8x128xf32>
    %35 = vector.multi_reduction <add>, %34, %cst_14 [0] : vector<1x8x128xf32> to vector<8x128xf32>
    %36 = arith.addf %33, %35 : vector<8x128xf32>
    %c0_15 = arith.constant 0 : index
    %c0_16 = arith.constant 0 : index
    %37 = vector.load %arg5[%c0_15, %c0_16] : memref<8x128xf32, #tpu.memory_space<vmem>>, vector<8x128xf32>
    tpu.vector_store %arg5[%c0_15, %c0_16], %36 {strides = array<i32>} : memref<8x128xf32, #tpu.memory_space<vmem>>, vector<8x128xf32>,
    %c0_i32_17 = arith.constant 0 : i32
    %38 = arith.cmpi eq, %arg1, %c0_i32_17 : i32
    %39 = arith.extui %38 : i1 to i32
    %c0_i32_18 = arith.constant 0 : i32
    %40 = arith.cmpi ne, %39, %c0_i32_18 : i32
    scf.if %40 {
      %c0_19 = arith.constant 0 : index
      %c0_20 = arith.constant 0 : index
      %41 = vector.load %arg5[%c0_19, %c0_20] : memref<8x128xf32, #tpu.memory_space<vmem>>, vector<8x128xf32>
      %c0_21 = arith.constant 0 : index
      %c0_22 = arith.constant 0 : index
      %42 = vector.load %arg4[%c0_21, %c0_22] : memref<8x128xf32, #tpu.memory_space<vmem>>, vector<8x128xf32>
      tpu.vector_store %arg4[%c0_21, %c0_22], %41 {strides = array<i32>} : memref<8x128xf32, #tpu.memory_space<vmem>>, vector<8x128xf32>,
    } else {
    }
    return
  }
  func.func @transform_0(%arg0: i32, %arg1: i32) -> (i32, i32) {
    %c1_i32 = arith.constant 1 : i32
    %0 = arith.muli %arg0, %c1_i32 : i32
    %1 = arith.addi %0, %arg1 : i32
    %c0_i32 = arith.constant 0 : i32
    %c0_i32_0 = arith.constant 0 : i32
    return %1, %c0_i32 : i32, i32
  }
  func.func @transform_1(%arg0: i32, %arg1: i32) -> (i32, i32) {
    %c1_i32 = arith.constant 1 : i32
    %0 = arith.muli %arg0, %c1_i32 : i32
    %1 = arith.addi %0, %arg1 : i32
    %c0_i32 = arith.constant 0 : i32
    %c0_i32_0 = arith.constant 0 : i32
    return %1, %c0_i32 : i32, i32
  }
  func.func @transform_2(%arg0: i32, %arg1: i32) -> (i32, i32) {
    %c0_i32 = arith.constant 0 : i32
    %c0_i32_0 = arith.constant 0 : i32
    return %arg0, %c0_i32 : i32, i32
  }
}

</mosaic_0001>

<llo_original>
// kernel: tpu_custom_call.1
$region0: #{tpu_custom_call.1}
  #allocation0 [shape = 'u32[]', space=smem, size = 0x4, offset = 0x4, fixed_abs, tag = 'smem constant byte address 0x4 - core index']
  #allocation1 [shape = 'u32[144,128]{1,0:T(1,128)}', space=vmem, size = 0x12000, scoped, tag = 'internal scratch']
  #allocation2 [shape = 'f32[8,128]{1,0:T(8,128)}', space=vmem, size = 0x1000, scoped, tag = 'scratch operand']
  %s0 = inlined_call_operand.hbm [shape: f32[16,128], index: 0, kind: input, shape index: {}]
  %s1 = inlined_call_operand.hbm [shape: f32[16,128], index: 1, kind: input, shape index: {}]
  %s2 = inlined_call_operand.hbm [shape: f32[16,128], index: 2, kind: output, shape index: {}]
  %s3 = sld [smem:[#allocation0]]
  $region57: #{tpu_custom_call.1} parent=0
    _
  %s5 = ssub.s32 1, %s3
  %s6 = scalar_select 0, %s5, %s3
  $region1: #{tpu_custom_call.1} parent=0
    #allocation3 [shape = 'u8[8192]{0}', space=vmem, size = 0x2000, scoped, tag = 'input window, operand 0']
    #allocation4 [shape = 's32[2]{0}', space=sflag, size = 0x8, scoped, tag = 'scoped memory for tpu_custom_call.1']
    #allocation5 [shape = 's32[2]{0}', space=sflag, size = 0x8, scoped, tag = 'scoped memory for tpu_custom_call.1']
    #allocation6 [shape = 'u8[8192]{0}', space=vmem, size = 0x2000, scoped, tag = 'input window, operand 1']
    #allocation7 [shape = 's32[2]{0}', space=sflag, size = 0x8, scoped, tag = 'scoped memory for tpu_custom_call.1']
    #allocation8 [shape = 'u8[8192]{0}', space=vmem, size = 0x2000, scoped, tag = 'output window, operand 0']
    %7 = vsyncpa [#allocation4], 0
    %s8 = scalar_lea.sflag [#allocation4], 1
    %9 = vsyncpa %s8, 0
    %10 = vsyncpa [#allocation7], 0
    %s11 = scalar_lea.sflag [#allocation7], 1
    %12 = vsyncpa %s11, 0
    %13 = vsyncpa [#allocation5], 0
    %s14 = scalar_lea.sflag [#allocation5], 1
    %15 = vsyncpa %s14, 0
    loop: start=0, step=1, limit=4
    $region2: #{tpu_custom_call.1} parent=1 // loop_pre_header
      _
    $region3: #{tpu_custom_call.1} parent=1 // loop_header
      %s17 = sphi 0, %s21
      %p18 = scmp.ge.s32.totalorder %s17, 4
      %s24 = sphi 0, %s36
      %s25 = sphi 0, %s32
      %s26 = sphi 0, %s24
      %s27 = sphi 0, %s25
      %s28 = sphi 0, %s26
      %s29 = sphi 0, %s27
      %s41 = sphi 0, %s43
      %s44 = sphi 0, %s41
      %s45 = sphi 0, %s44
      %s61 = sphi 0, %s45
      %s69 = sphi 0, %s71
      %s72 = sphi 0, %s69
      %s73 = sphi 0, %s72
      %s89 = sphi 0, %s73
      %s95 = sphi 0, %s97
      %s98 = sphi 0, %s95
      %s99 = sphi 0, %s98
      %s115 = sphi 0, %s99
    $region4: #{tpu_custom_call.1} parent=1 // loop_header_branch
      %20 = sbr.rel (%p18) target = $region8
    $region5: #{tpu_custom_call.1} parent=1 // loop_body
      %s22 = ssub.s32 %s17, 1
      %s23 = ssub.s32 %s17, 2
      %s30 = sadd.s32 1, %s25
      %p31 = scmp.ge.s32.totalorder %s30, 1
      %s32 = scalar_select %p31, 0, %s30
      %s33 = sadd.s32 1, %s24
      %s34 = scalar_select %p31, %s33, %s24
      %p35 = scmp.ge.s32.totalorder %s34, 2
      %s36 = scalar_select %p35, 0, %s34
      %s37 = sadd.s32 %s24, %s25
      %s38 = sadd.s32 %s36, %s32
      %s39 = ssub.s32 %s37, %s38
      %p40 = scmp.eq.s32.totalorder %s39, 0
      %s42 = sadd.s32 %s41, 1
      %s43 = scalar_select %p40, %s41, %s42
      %p46 = pneg %p40
      %p47 = scmp.eq.s32.totalorder %s17, 1
      %p48 = por %p46, %p47
      %p49 = scmp.ne.s32.totalorder %s41, %s44
      %p50 = scmp.eq.s32.totalorder %s17, 0
      %p51 = por %p49, %p50
      %p52 = scmp.ne.s32.totalorder %s41, %s44
      %p53 = scmp.eq.s32.totalorder %s22, 1
      %p54 = por %p52, %p53
      %p55 = scmp.ne.s32.totalorder %s44, %s45
      %p56 = scmp.eq.s32.totalorder %s22, 0
      %p57 = por %p55, %p56
      %p58 = scmp.ne.s32.totalorder %s44, %s45
      %p59 = scmp.eq.s32.totalorder %s23, 1
      %p60 = por %p58, %p59
      %p62 = scmp.ne.s32.totalorder %s45, %s61
      %p63 = scmp.eq.s32.totalorder %s23, 0
      %p64 = por %p62, %p63
      %s65 = sadd.s32 %s24, %s25
      %s66 = sadd.s32 %s36, %s32
      %s67 = ssub.s32 %s65, %s66
      %p68 = scmp.eq.s32.totalorder %s67, 0
      %s70 = sadd.s32 %s69, 1
      %s71 = scalar_select %p68, %s69, %s70
      %p74 = pneg %p68
      %p75 = scmp.eq.s32.totalorder %s17, 1
      %p76 = por %p74, %p75
      %p77 = scmp.ne.s32.totalorder %s69, %s72
      %p78 = scmp.eq.s32.totalorder %s17, 0
      %p79 = por %p77, %p78
      %p80 = scmp.ne.s32.totalorder %s69, %s72
      %p81 = scmp.eq.s32.totalorder %s22, 1
      %p82 = por %p80, %p81
      %p83 = scmp.ne.s32.totalorder %s72, %s73
      %p84 = scmp.eq.s32.totalorder %s22, 0
      %p85 = por %p83, %p84
      %p86 = scmp.ne.s32.totalorder %s72, %s73
      %p87 = scmp.eq.s32.totalorder %s23, 1
      %p88 = por %p86, %p87
      %p90 = scmp.ne.s32.totalorder %s73, %s89
      %p91 = scmp.eq.s32.totalorder %s23, 0
      %p92 = por %p90, %p91
      %s93 = ssub.s32 %s24, %s36
      %p94 = scmp.eq.s32.totalorder %s93, 0
      %s96 = sadd.s32 %s95, 1
      %s97 = scalar_select %p94, %s95, %s96
      %p100 = pneg %p94
      %p101 = scmp.eq.s32.totalorder %s17, 1
      %p102 = por %p100, %p101
      %p103 = scmp.ne.s32.totalorder %s95, %s98
      %p104 = scmp.eq.s32.totalorder %s17, 0
      %p105 = por %p103, %p104
      %p106 = scmp.ne.s32.totalorder %s95, %s98
      %p107 = scmp.eq.s32.totalorder %s22, 1
      %p108 = por %p106, %p107
      %p109 = scmp.ne.s32.totalorder %s98, %s99
      %p110 = scmp.eq.s32.totalorder %s22, 0
      %p111 = por %p109, %p110
      %p112 = scmp.ne.s32.totalorder %s98, %s99
      %p113 = scmp.eq.s32.totalorder %s23, 1
      %p114 = por %p112, %p113
      %p116 = scmp.ne.s32.totalorder %s99, %s115
      %p117 = scmp.eq.s32.totalorder %s23, 0
      %p118 = por %p116, %p117
      %p119 = scmp.le.s32.totalorder 1, %s17
      %p120 = scmp.lt.s32.totalorder %s17, 3
      %p121 = pnand %p119, %p120
      %p122 = pneg %p121
      // Predicated region
      $region9: #{tpu_custom_call.1} parent=5 // pred_check
        _
      $region10: #{tpu_custom_call.1} parent=5 // pred_check_branch
        %124 = sbr.rel (%p121) target = $region12
      $region11: #{tpu_custom_call.1} parent=5 // pred_region
        %s125 = ssub.s32 %s17, 1
      $region12: #{tpu_custom_call.1} parent=5 // pred_fallthru
        _
      %p126 = scmp.lt.s32.totalorder %s17, 2
      // Predicated region
      $region13: #{tpu_custom_call.1} parent=5 // pred_check
        %p127 = pneg %p126
      $region14: #{tpu_custom_call.1} parent=5 // pred_check_branch
        %129 = sbr.rel (%p127) target = $region16
      $region15: #{tpu_custom_call.1} parent=5 // pred_region
        // Predicated region
        $region17: #{tpu_custom_call.1} parent=15 // pred_check
          %p130 = pneg %p51
        $region18: #{tpu_custom_call.1} parent=15 // pred_check_branch
          %132 = sbr.rel (%p130) target = $region20
        $region19: #{tpu_custom_call.1} parent=15 // pred_region
          %s133 = sand.u32 %s41, 1
          %s134 = scalar_lea.sflag [#allocation4], %s133
          %s135 = sand.u32 %s41, 1
          %s136 = smul.addr %s135, 8
          %s137 = scalar_lea.vmem [#allocation3], %s136
          %s138 = sadd.s32 %s24, %s25
          %s140 = ssub.s32 128, 128
          %141 = vsyncadd %s134, %s140
          %s142 = smul.addr %s138, 128
          %s143 = scalar_lea.hbm %s0, %s142
          %s145 = sshll.u32 %s137, 4
          %s146 = int_to_ptr.vmem [resolvable:$true] %s145
          %148 = dma.hbm_to_vmem [thread:$0]  %s143, 128, %s146, %s134
        $region20: #{tpu_custom_call.1} parent=15 // pred_fallthru
          _
        // Predicated region
        $region21: #{tpu_custom_call.1} parent=15 // pred_check
          %p149 = pneg %p79
        $region22: #{tpu_custom_call.1} parent=15 // pred_check_branch
          %151 = sbr.rel (%p149) target = $region24
        $region23: #{tpu_custom_call.1} parent=15 // pred_region
          %s152 = sand.u32 %s69, 1
          %s153 = scalar_lea.sflag [#allocation7], %s152
          %s154 = sand.u32 %s69, 1
          %s155 = smul.addr %s154, 8
          %s156 = scalar_lea.vmem [#allocation6], %s155
          %s157 = sadd.s32 %s24, %s25
          %s159 = ssub.s32 128, 128
          %160 = vsyncadd %s153, %s159
          %s161 = smul.addr %s157, 128
          %s162 = scalar_lea.hbm %s1, %s161
          %s164 = sshll.u32 %s156, 4
          %s165 = int_to_ptr.vmem [resolvable:$true] %s164
          %167 = dma.hbm_to_vmem [thread:$0]  %s162, 128, %s165, %s153
        $region24: #{tpu_custom_call.1} parent=15 // pred_fallthru
          _
      $region16: #{tpu_custom_call.1} parent=5 // pred_fallthru
        _
      %p168 = scmp.le.s32.totalorder 1, %s17
      %p169 = scmp.lt.s32.totalorder %s17, 3
      %p170 = pnand %p168, %p169
      %p171 = pneg %p170
      // Predicated region
      $region25: #{tpu_custom_call.1} parent=5 // pred_check
        _
      $region26: #{tpu_custom_call.1} parent=5 // pred_check_branch
        %173 = sbr.rel (%p170) target = $region28
      $region27: #{tpu_custom_call.1} parent=5 // pred_region
        %s174 = ssub.s32 %s17, 1
        %s175 = sand.u32 %s44, 1
        %s176 = scalar_lea.sflag [#allocation4], %s175
        %s177 = sand.u32 %s44, 1
        %s178 = smul.addr %s177, 8
        %s179 = scalar_lea.vmem [#allocation3], %s178
        // Predicated region
        $region29: #{tpu_custom_call.1} parent=27 // pred_check
          %p180 = pneg %p57
        $region30: #{tpu_custom_call.1} parent=27 // pred_check_branch
          %182 = sbr.rel (%p180) target = $region32
        $region31: #{tpu_custom_call.1} parent=27 // pred_region
          %183 = dma.done %s176, 128
        $region32: #{tpu_custom_call.1} parent=27 // pred_fallthru
          _
        %s184 = sand.u32 %s72, 1
        %s185 = scalar_lea.sflag [#allocation7], %s184
        %s186 = sand.u32 %s72, 1
        %s187 = smul.addr %s186, 8
        %s188 = scalar_lea.vmem [#allocation6], %s187
        // Predicated region
        $region33: #{tpu_custom_call.1} parent=27 // pred_check
          %p189 = pneg %p85
        $region34: #{tpu_custom_call.1} parent=27 // pred_check_branch
          %191 = sbr.rel (%p189) target = $region36
        $region35: #{tpu_custom_call.1} parent=27 // pred_region
          %192 = dma.done %s185, 128
        $region36: #{tpu_custom_call.1} parent=27 // pred_fallthru
          _
        %s193 = sand.u32 %s44, 1
        %s194 = scalar_lea.sflag [#allocation4], %s193
        %s195 = sand.u32 %s44, 1
        %s196 = smul.addr %s195, 8
        %s197 = scalar_lea.vmem [#allocation3], %s196
        %p198 = pneg %p57
        %p199 = pneg %p54
        %s200 = sand.u32 %s72, 1
        %s201 = scalar_lea.sflag [#allocation7], %s200
        %s202 = sand.u32 %s72, 1
        %s203 = smul.addr %s202, 8
        %s204 = scalar_lea.vmem [#allocation6], %s203
        %p205 = pneg %p85
        %p206 = pneg %p82
        %p207 = pneg %p111
        %p208 = pneg %p108
        %s209 = sand.u32 %s98, 1
        %s210 = scalar_lea.sflag [#allocation5], %s209
        %s211 = sand.u32 %s98, 1
        %s212 = smul.addr %s211, 8
        %s213 = scalar_lea.vmem [#allocation8], %s212
        %s214 = sadd.s32 %s26, %s27
        %s215 = sadd.s32 %s26, %s27
        %p216 = scmp.eq.s32.totalorder %s27, 0
        // Predicated region
        $region37: #{tpu_custom_call.1} parent=27 // pred_check
          %p217 = pneg %p216
        $region38: #{tpu_custom_call.1} parent=27 // pred_check_branch
          %219 = sbr.rel (%p217) target = $region40
        $region39: #{tpu_custom_call.1} parent=27 // pred_region
          %220 = vst [vmem:[#allocation2] sm:$0xff] 0.0
        $region40: #{tpu_custom_call.1} parent=27 // pred_fallthru
          _
        %v221 = vld [vmem:[%s179] sm:$0xff]
        %v222 = vld [vmem:[%s188] sm:$0xff]
        %v223 = vand.u32 2147483647, %v221
        %v224 = vsub.f32 0.0, %v223
        %v225 = vmul.f32 %v224, 1.442695
        %v226 = vpow.pop %v225
        %v227 = vmax.f32 %v221, 0.0
        %v228 = vmul.f32 %v221, %v222
        %v229 = vsub.f32 %v227, %v228
        %v230 = vadd.f32 %v226, 1.0
        %v231 = vlog2.pop %v230
        %v232 = vmul.f32 %v231, 0.6931472
        %v233 = vmul.f32 -0.5, %v226
        %v234 = vadd.f32 %v233, 1.0
        %v235 = vmul.f32 %v234, %v226
        %v236 = vand.u32 2147483647, %v226
        %vm237 = vcmp.lt.f32.partialorder %v236, 0.0004427343
        %v238 = vsel %vm237, %v235, %v232
        %v239 = vadd.f32 %v229, %v238
        %vm240 = vcmp.ge.f32.partialorder %v221, 0.0
        %vm241 = vcmp.ge.f32.partialorder %v222, 0.5
        %vm242 = vmxor %vm240, %vm241
        %vm243 = vmxor %vm242, 1
        %v244 = vsel %vm243, 1.0, %v226
        %v245 = vadd.f32 %v226, 1.0
        %v246 = vrcp.pop %v245
        %v247 = vmul.f32 %v244, %v246
        %v248 = vsub.f32 1.0, %v247
        %v249 = vmax.f32 %v248, 0.0
        %v250 = vmul.f32 %v249, %v249
        %v251 = vmul.f32 %v250, %v239
        %v252 = vld [vmem:[#allocation2] sm:$0xff]
        %v253 = vadd.f32 %v251, 0.0
        %v254 = vadd.f32 %v252, %v253
        %255 = vst [vmem:[#allocation2] sm:$0xff] %v254
        // Predicated region
        $region41: #{tpu_custom_call.1} parent=27 // pred_check
          %p256 = pneg %p216
        $region42: #{tpu_custom_call.1} parent=27 // pred_check_branch
          %258 = sbr.rel (%p256) target = $region44
        $region43: #{tpu_custom_call.1} parent=27 // pred_region
          %v259 = vld [vmem:[#allocation2] sm:$0xff]
          %260 = vst [vmem:[%s213] sm:$0xff] %v259
        $region44: #{tpu_custom_call.1} parent=27 // pred_fallthru
          _
        %s261 = sand.u32 %s98, 1
        %s262 = scalar_lea.sflag [#allocation5], %s261
        %s263 = sand.u32 %s98, 1
        %s264 = smul.addr %s263, 8
        %s265 = scalar_lea.vmem [#allocation8], %s264
        // Predicated region
        $region45: #{tpu_custom_call.1} parent=27 // pred_check
          %p266 = pneg %p108
        $region46: #{tpu_custom_call.1} parent=27 // pred_check_branch
          %268 = sbr.rel (%p266) target = $region48
        $region47: #{tpu_custom_call.1} parent=27 // pred_region
          %s270 = ssub.s32 128, 128
          %271 = vsyncadd %s262, %s270
          %s272 = smul.addr %s26, 128
          %s273 = scalar_lea.hbm %s2, %s272
          %s275 = sshll.u32 %s265, 4
          %s276 = int_to_ptr.vmem [resolvable:$true] %s275
          %278 = dma.vmem_to_hbm [thread:$0]  %s276, 128, %s273, %s262
        $region48: #{tpu_custom_call.1} parent=27 // pred_fallthru
          _
      $region28: #{tpu_custom_call.1} parent=5 // pred_fallthru
        _
      %p279 = scmp.le.s32.totalorder 2, %s17
      // Predicated region
      $region49: #{tpu_custom_call.1} parent=5 // pred_check
        %p280 = pneg %p279
      $region50: #{tpu_custom_call.1} parent=5 // pred_check_branch
        %282 = sbr.rel (%p280) target = $region52
      $region51: #{tpu_custom_call.1} parent=5 // pred_region
        %s283 = ssub.s32 %s17, 2
        // Predicated region
        $region53: #{tpu_custom_call.1} parent=51 // pred_check
          %p284 = pneg %p114
        $region54: #{tpu_custom_call.1} parent=51 // pred_check_branch
          %286 = sbr.rel (%p284) target = $region56
        $region55: #{tpu_custom_call.1} parent=51 // pred_region
          %s287 = sand.u32 %s99, 1
          %s288 = scalar_lea.sflag [#allocation5], %s287
          %s289 = sand.u32 %s99, 1
          %s290 = smul.addr %s289, 8
          %s291 = scalar_lea.vmem [#allocation8], %s290
          %292 = dma.done %s288, 128
        $region56: #{tpu_custom_call.1} parent=51 // pred_fallthru
          _
      $region52: #{tpu_custom_call.1} parent=5 // pred_fallthru
        _
    $region6: #{tpu_custom_call.1} parent=1 // loop_footer
      %s21 = sadd.s32 1, %s17
    $region7: #{tpu_custom_call.1} parent=1 // loop_footer_branch
      %16 = sbr.rel target = $region3
    $region8: #{tpu_custom_call.1} parent=1 // loop_exit
      _
    %293 = vsyncpa [#allocation4], 1
    %s294 = scalar_lea.sflag [#allocation4], 1
    %295 = vsyncpa %s294, 1
    %296 = vsyncpa [#allocation7], 1
    %s297 = scalar_lea.sflag [#allocation7], 1
    %298 = vsyncpa %s297, 1
    %299 = vsyncpa [#allocation5], 1
    %s300 = scalar_lea.sflag [#allocation5], 1
    %301 = vsyncpa %s300, 1

</llo_original>
